<compile_context>
chip_gen: v7x
topology: tpu7x:2x2x1
jax: 0.10.0
libtpu: 0.0.40
codegen_flags: <defaults>
</compile_context>

<pallas_src>
import jax
import jax.numpy as jnp
from jax.experimental import pallas as pl
from jax.experimental.pallas import tpu as pltpu


def policy_kernel(x_ref,
                  w1_ref, b1_ref,
                  w2_ref, b2_ref,
                  w3_ref, b3_ref,
                  wm_ref, bm_ref,
                  mean_ref):
    h = x_ref[...]                                           # (S, tb)

    def hidden_layer(h, w_ref, b_ref):
        z = jnp.dot(w_ref[...], h,
                    preferred_element_type=jnp.float32) + b_ref[...]
        # Linear -> tanh, then Dropout (identity in eval) -> tanh again.
        return jnp.tanh(jnp.tanh(z))

    h = hidden_layer(h, w1_ref, b1_ref)                      # (H1, tb)
    h = hidden_layer(h, w2_ref, b2_ref)                      # (H2, tb)
    h = hidden_layer(h, w3_ref, b3_ref)                      # (H3, tb)

    am = jnp.dot(wm_ref[...], h,
                 preferred_element_type=jnp.float32) + bm_ref[...]   # (A, tb)

    # Quaternion-style normalization of rows 3:7, assembled with full-width
    # sublane iota-mask selects (no sub-array slicing / concatenation).
    row = jax.lax.broadcasted_iota(jnp.int32, am.shape, 0)
    in_quat = jnp.logical_and(row >= 3, row < 7)
    is_tail = row >= 7

    t = jnp.tanh(am)                                         # EUP
    s = jax.nn.sigmoid(am)                                   # EUP

    sq = jnp.where(in_quat, t * t, 0.0)                      # masked sum of squares
    inv_norm = jax.lax.rsqrt(jnp.sum(sq, axis=0, keepdims=True))   # (1, tb)
    quat = t * inv_norm

    mean_ref[...] = jnp.where(in_quat, quat, jnp.where(is_tail, s, am))


def policy_forward(x, params, *, tb=1024):
    """x: (B, S).  params: PyTorch-layout (out,in) weights, (out,1) biases,
    (1, A) log_std.  Returns (action_mean, action_log_std, action_std)."""
    (w1, b1, w2, b2, w3, b3, wm, bm, logstd) = params
    B, S = x.shape
    A = wm.shape[0]

    # Lane tile: multiple of 128, <= 1024 (vreg pressure on v5e), and capped
    # at ~half the batch so the "parallel" axis has >= 2 steps when B is large
    # (v7x megacore); for small B it degrades gracefully to a single 128 tile.
    half = (((B + 1) // 2) + 127) // 128 * 128
    tb = max(128, min((max(tb, 128) // 128) * 128, half))
    Bp = ((B + tb - 1) // tb) * tb
    grid = (Bp // tb,)

    xT = x.T                                                 # (S, B): batch on lanes
    if Bp != B:
        xT = jnp.pad(xT, ((0, 0), (0, Bp - B)))

    # Weights/biases: full-array blocks, constant block index -> VMEM resident.
    resident = lambda a: pl.BlockSpec(a.shape, lambda i: (0, 0))

    mean_t = pl.pallas_call(
        policy_kernel,
        out_shape=jax.ShapeDtypeStruct((A, Bp), jnp.float32),
        grid=grid,
        in_specs=[
            pl.BlockSpec((S, tb), lambda i: (0, i)),         # x: batch-tiled on lanes
            resident(w1), resident(b1),
            resident(w2), resident(b2),
            resident(w3), resident(b3),
            resident(wm), resident(bm),
        ],
        out_specs=pl.BlockSpec((A, tb), lambda i: (0, i)),   # lane-dense output slab
        compiler_params=pltpu.CompilerParams(
            dimension_semantics=("parallel",),
            vmem_limit_bytes=16 * 1024 * 1024),
    )(xT, w1, b1, w2, b2, w3, b3, wm, bm)

    action_mean = mean_t[:, :B].T                            # back to (B, A)

    # Constant-per-row outputs: computed once on the (1, A) parameter and
    # broadcast in the XLA wrapper (no Pallas traffic, no per-element exp).
    action_log_std = jnp.broadcast_to(logstd, (B, A))
    action_std = jnp.broadcast_to(jnp.exp(logstd), (B, A))
    return action_mean, action_log_std, action_std


def linear_init(key, in_dim, out_dim):
    """PyTorch nn.Linear default init: U(-1/sqrt(fan_in), 1/sqrt(fan_in)).
    Returns W in PyTorch (out, in) layout and b as (out, 1)."""
    kw, kb = jax.random.split(key)
    bound = 1.0 / (in_dim ** 0.5)
    w = jax.random.uniform(kw, (out_dim, in_dim), minval=-bound, maxval=bound,
                           dtype=jnp.float32)
    b = jax.random.uniform(kb, (out_dim, 1), minval=-bound, maxval=bound,
                           dtype=jnp.float32)
    return w, b


def reference_forward(x, params):
    """Pure-JAX reference mirroring the PyTorch module exactly."""
    (w1, b1, w2, b2, w3, b3, wm, bm, logstd) = params
    h = x
    for w, b in ((w1, b1), (w2, b2), (w3, b3)):
        h = jnp.tanh(jnp.tanh(h @ w.T + b.T))
    am = h @ wm.T + bm.T
    norma = jnp.tanh(am[:, 3:7])
    norm = jnp.sqrt(jnp.sum(norma * norma, axis=1, keepdims=True))
    mean = jnp.concatenate([am[:, :3], norma / norm,
                            jax.nn.sigmoid(am[:, 7:])], axis=1)
    log_std = jnp.broadcast_to(logstd, mean.shape)
    return mean, log_std, jnp.exp(log_std)


if __name__ == "__main__":
    # small shapes consistent with the module
    batch = 8
    state_dim = 16
    hidden = (32, 32, 32)
    action_dim = 10        # must be >= 8 because of the [:, 3:7] / [:, 7:] split
    log_std_val = 0.0

    key = jax.random.PRNGKey(0)
    k_x, k1, k2, k3, km = jax.random.split(key, 5)

    x = jax.random.normal(k_x, (batch, state_dim), dtype=jnp.float32)

    w1, b1 = linear_init(k1, state_dim, hidden[0])
    w2, b2 = linear_init(k2, hidden[0], hidden[1])
    w3, b3 = linear_init(k3, hidden[1], hidden[2])
    wm, bm = linear_init(km, hidden[2], action_dim)
    wm = wm * 0.1                      # action_mean.weight.data.mul_(0.1)
    bm = bm * 0.0                      # action_mean.bias.data.mul_(0.0)
    logstd = jnp.ones((1, action_dim), dtype=jnp.float32) * log_std_val

    params = (w1, b1, w2, b2, w3, b3, wm, bm, logstd)

    mean, log_std, std = policy_forward(x, params)
    jax.block_until_ready((mean, log_std, std))

    # sanity check against a pure-JAX reference
    ref_mean, ref_log_std, ref_std = reference_forward(x, params)
    assert jnp.allclose(mean, ref_mean, atol=1e-5), "action_mean mismatch"
    assert jnp.allclose(log_std, ref_log_std, atol=1e-6), "log_std mismatch"
    assert jnp.allclose(std, ref_std, atol=1e-6), "std mismatch"

    print("KERNEL_OK")
</pallas_src>

<mosaic_0001>
module attributes {stable_mosaic.version = 11 : i64} {
  func.func @policy_kernel(%arg0: i32, %arg1: memref<16x128xf32, #tpu.memory_space<vmem>>, %arg2: memref<32x16xf32, #tpu.memory_space<vmem>>, %arg3: memref<32x1xf32, #tpu.memory_space<vmem>>, %arg4: memref<32x32xf32, #tpu.memory_space<vmem>>, %arg5: memref<32x1xf32, #tpu.memory_space<vmem>>, %arg6: memref<32x32xf32, #tpu.memory_space<vmem>>, %arg7: memref<32x1xf32, #tpu.memory_space<vmem>>, %arg8: memref<10x32xf32, #tpu.memory_space<vmem>>, %arg9: memref<10x1xf32, #tpu.memory_space<vmem>>, %arg10: memref<10x128xf32, #tpu.memory_space<vmem>>) attributes {dimension_semantics = [#tpu.dimension_semantics<parallel>], iteration_bounds = array<i64: 1>, scalar_prefetch = 0 : i64, scratch_operands = 0 : i64, tpu.core_type = #tpu.core_type<tc>, window_params = [{transform_indices = @transform_0, window_bounds = array<i64: 16, 128>}, {pipeline_mode = #tpu.pipeline_mode<synchronous>, transform_indices = @transform_1, window_bounds = array<i64: 32, 16>}, {pipeline_mode = #tpu.pipeline_mode<synchronous>, transform_indices = @transform_2, window_bounds = array<i64: 32, 1>}, {pipeline_mode = #tpu.pipeline_mode<synchronous>, transform_indices = @transform_3, window_bounds = array<i64: 32, 32>}, {pipeline_mode = #tpu.pipeline_mode<synchronous>, transform_indices = @transform_4, window_bounds = array<i64: 32, 1>}, {pipeline_mode = #tpu.pipeline_mode<synchronous>, transform_indices = @transform_5, window_bounds = array<i64: 32, 32>}, {pipeline_mode = #tpu.pipeline_mode<synchronous>, transform_indices = @transform_6, window_bounds = array<i64: 32, 1>}, {pipeline_mode = #tpu.pipeline_mode<synchronous>, transform_indices = @transform_7, window_bounds = array<i64: 10, 32>}, {pipeline_mode = #tpu.pipeline_mode<synchronous>, transform_indices = @transform_8, window_bounds = array<i64: 10, 1>}, {transform_indices = @transform_9, window_bounds = array<i64: 10, 128>}]} {
    %c0 = arith.constant 0 : index
    %c0_0 = arith.constant 0 : index
    %0 = vector.load %arg1[%c0, %c0_0] : memref<16x128xf32, #tpu.memory_space<vmem>>, vector<16x128xf32>
    %c0_1 = arith.constant 0 : index
    %c0_2 = arith.constant 0 : index
    %1 = vector.load %arg2[%c0_1, %c0_2] : memref<32x16xf32, #tpu.memory_space<vmem>>, vector<32x16xf32>
    %cst = arith.constant dense<0.000000e+00> : vector<32x128xf32>
    %2 = tpu.matmul %1, %0, %cst {dimension_numbers = #tpu.dot_dimension_numbers<[1], [0], [0], [1], [0, 0, 1, 1], [], []>} : vector<32x16xf32>, vector<16x128xf32>, vector<32x128xf32> -> vector<32x128xf32>
    %c0_3 = arith.constant 0 : index
    %c0_4 = arith.constant 0 : index
    %3 = vector.load %arg3[%c0_3, %c0_4] : memref<32x1xf32, #tpu.memory_space<vmem>>, vector<32x1xf32>
    %4 = vector.broadcast %3 : vector<32x1xf32> to vector<32x128xf32>
    %5 = arith.addf %2, %4 : vector<32x128xf32>
    %6 = math.tanh %5 : vector<32x128xf32>
    %7 = math.tanh %6 : vector<32x128xf32>
    %c0_5 = arith.constant 0 : index
    %c0_6 = arith.constant 0 : index
    %8 = vector.load %arg4[%c0_5, %c0_6] : memref<32x32xf32, #tpu.memory_space<vmem>>, vector<32x32xf32>
    %cst_7 = arith.constant dense<0.000000e+00> : vector<32x128xf32>
    %9 = tpu.matmul %8, %7, %cst_7 {dimension_numbers = #tpu.dot_dimension_numbers<[1], [0], [0], [1], [0, 0, 1, 1], [], []>} : vector<32x32xf32>, vector<32x128xf32>, vector<32x128xf32> -> vector<32x128xf32>
    %c0_8 = arith.constant 0 : index
    %c0_9 = arith.constant 0 : index
    %10 = vector.load %arg5[%c0_8, %c0_9] : memref<32x1xf32, #tpu.memory_space<vmem>>, vector<32x1xf32>
    %11 = vector.broadcast %10 : vector<32x1xf32> to vector<32x128xf32>
    %12 = arith.addf %9, %11 : vector<32x128xf32>
    %13 = math.tanh %12 : vector<32x128xf32>
    %14 = math.tanh %13 : vector<32x128xf32>
    %c0_10 = arith.constant 0 : index
    %c0_11 = arith.constant 0 : index
    %15 = vector.load %arg6[%c0_10, %c0_11] : memref<32x32xf32, #tpu.memory_space<vmem>>, vector<32x32xf32>
    %cst_12 = arith.constant dense<0.000000e+00> : vector<32x128xf32>
    %16 = tpu.matmul %15, %14, %cst_12 {dimension_numbers = #tpu.dot_dimension_numbers<[1], [0], [0], [1], [0, 0, 1, 1], [], []>} : vector<32x32xf32>, vector<32x128xf32>, vector<32x128xf32> -> vector<32x128xf32>
    %c0_13 = arith.constant 0 : index
    %c0_14 = arith.constant 0 : index
    %17 = vector.load %arg7[%c0_13, %c0_14] : memref<32x1xf32, #tpu.memory_space<vmem>>, vector<32x1xf32>
    %18 = vector.broadcast %17 : vector<32x1xf32> to vector<32x128xf32>
    %19 = arith.addf %16, %18 : vector<32x128xf32>
    %20 = math.tanh %19 : vector<32x128xf32>
    %21 = math.tanh %20 : vector<32x128xf32>
    %c0_15 = arith.constant 0 : index
    %c0_16 = arith.constant 0 : index
    %22 = vector.load %arg8[%c0_15, %c0_16] : memref<10x32xf32, #tpu.memory_space<vmem>>, vector<10x32xf32>
    %cst_17 = arith.constant dense<0.000000e+00> : vector<10x128xf32>
    %23 = tpu.matmul %22, %21, %cst_17 {dimension_numbers = #tpu.dot_dimension_numbers<[1], [0], [0], [1], [0, 0, 1, 1], [], []>} : vector<10x32xf32>, vector<32x128xf32>, vector<10x128xf32> -> vector<10x128xf32>
    %c0_18 = arith.constant 0 : index
    %c0_19 = arith.constant 0 : index
    %24 = vector.load %arg9[%c0_18, %c0_19] : memref<10x1xf32, #tpu.memory_space<vmem>>, vector<10x1xf32>
    %25 = vector.broadcast %24 : vector<10x1xf32> to vector<10x128xf32>
    %26 = arith.addf %23, %25 : vector<10x128xf32>
    %27 = tpu.iota {dimensions = array<i32: 0>} : vector<10x128xi32>
    %c3_i32 = arith.constant 3 : i32
    %28 = vector.broadcast %c3_i32 : i32 to vector<10x128xi32>
    %29 = arith.cmpi sge, %27, %28 : vector<10x128xi32>
    %c7_i32 = arith.constant 7 : i32
    %30 = vector.broadcast %c7_i32 : i32 to vector<10x128xi32>
    %31 = arith.cmpi slt, %27, %30 : vector<10x128xi32>
    %32 = arith.andi %29, %31 : vector<10x128xi1>
    %c7_i32_20 = arith.constant 7 : i32
    %33 = vector.broadcast %c7_i32_20 : i32 to vector<10x128xi32>
    %34 = arith.cmpi sge, %27, %33 : vector<10x128xi32>
    %35 = math.tanh %26 : vector<10x128xf32>
    %36 = arith.negf %26 : vector<10x128xf32>
    %37 = math.exp %36 : vector<10x128xf32>
    %cst_21 = arith.constant 1.000000e+00 : f32
    %38 = vector.broadcast %cst_21 : f32 to vector<10x128xf32>
    %39 = arith.addf %38, %37 : vector<10x128xf32>
    %40 = arith.divf %38, %39 : vector<10x128xf32>
    %41 = arith.mulf %35, %35 : vector<10x128xf32>
    %cst_22 = arith.constant 0.000000e+00 : f32
    %42 = vector.broadcast %cst_22 : f32 to vector<10x128xf32>
    %43 = arith.select %32, %41, %42 : vector<10x128xi1>, vector<10x128xf32>
    %cst_23 = arith.constant dense<0.000000e+00> : vector<128xf32>
    %44 = vector.multi_reduction <add>, %43, %cst_23 [0] : vector<10x128xf32> to vector<128xf32>
    %45 = vector.shape_cast %44 : vector<128xf32> to vector<1x128xf32>
    %46 = math.rsqrt %45 : vector<1x128xf32>
    %47 = vector.broadcast %46 : vector<1x128xf32> to vector<10x128xf32>
    %48 = arith.mulf %35, %47 : vector<10x128xf32>
    %49 = arith.select %34, %40, %26 : vector<10x128xi1>, vector<10x128xf32>
    %50 = arith.select %32, %48, %49 : vector<10x128xi1>, vector<10x128xf32>
    %c0_24 = arith.constant 0 : index
    %c0_25 = arith.constant 0 : index
    %51 = vector.load %arg10[%c0_24, %c0_25] : memref<10x128xf32, #tpu.memory_space<vmem>>, vector<10x128xf32>
    tpu.vector_store %arg10[%c0_24, %c0_25], %50 {strides = array<i32>} : memref<10x128xf32, #tpu.memory_space<vmem>>, vector<10x128xf32>,
    return
  }
  func.func @transform_0(%arg0: i32) -> (i32, i32) {
    %c0_i32 = arith.constant 0 : i32
    %c0_i32_0 = arith.constant 0 : i32
    return %c0_i32, %arg0 : i32, i32
  }
  func.func @transform_1(%arg0: i32) -> (i32, i32) {
    %c0_i32 = arith.constant 0 : i32
    %c0_i32_0 = arith.constant 0 : i32
    %c0_i32_1 = arith.constant 0 : i32
    return %c0_i32, %c0_i32_0 : i32, i32
  }
  func.func @transform_2(%arg0: i32) -> (i32, i32) {
    %c0_i32 = arith.constant 0 : i32
    %c0_i32_0 = arith.constant 0 : i32
    %c0_i32_1 = arith.constant 0 : i32
    return %c0_i32, %c0_i32_0 : i32, i32
  }
  func.func @transform_3(%arg0: i32) -> (i32, i32) {
    %c0_i32 = arith.constant 0 : i32
    %c0_i32_0 = arith.constant 0 : i32
    %c0_i32_1 = arith.constant 0 : i32
    return %c0_i32, %c0_i32_0 : i32, i32
  }
  func.func @transform_4(%arg0: i32) -> (i32, i32) {
    %c0_i32 = arith.constant 0 : i32
    %c0_i32_0 = arith.constant 0 : i32
    %c0_i32_1 = arith.constant 0 : i32
    return %c0_i32, %c0_i32_0 : i32, i32
  }
  func.func @transform_5(%arg0: i32) -> (i32, i32) {
    %c0_i32 = arith.constant 0 : i32
    %c0_i32_0 = arith.constant 0 : i32
    %c0_i32_1 = arith.constant 0 : i32
    return %c0_i32, %c0_i32_0 : i32, i32
  }
  func.func @transform_6(%arg0: i32) -> (i32, i32) {
    %c0_i32 = arith.constant 0 : i32
    %c0_i32_0 = arith.constant 0 : i32
    %c0_i32_1 = arith.constant 0 : i32
    return %c0_i32, %c0_i32_0 : i32, i32
  }
  func.func @transform_7(%arg0: i32) -> (i32, i32) {
    %c0_i32 = arith.constant 0 : i32
    %c0_i32_0 = arith.constant 0 : i32
    %c0_i32_1 = arith.constant 0 : i32
    return %c0_i32, %c0_i32_0 : i32, i32
  }
  func.func @transform_8(%arg0: i32) -> (i32, i32) {
    %c0_i32 = arith.constant 0 : i32
    %c0_i32_0 = arith.constant 0 : i32
    %c0_i32_1 = arith.constant 0 : i32
    return %c0_i32, %c0_i32_0 : i32, i32
  }
  func.func @transform_9(%arg0: i32) -> (i32, i32) {
    %c0_i32 = arith.constant 0 : i32
    %c0_i32_0 = arith.constant 0 : i32
    return %c0_i32, %arg0 : i32, i32
  }
}

</mosaic_0001>

<llo_original>
// kernel: tpu_custom_call.1
$region0: #{tpu_custom_call.1}
  #allocation0 [shape = 'u32[]', space=smem, size = 0x4, offset = 0x4, fixed_abs, tag = 'smem constant byte address 0x4 - core index']
  #allocation1 [shape = 'u32[144,128]{1,0:T(1,128)}', space=vmem, size = 0x12000, scoped, tag = 'internal scratch']
  %s0 = inlined_call_operand.vmem [shape: f32[16,128], index: 0, kind: input, shape index: {}]
  %s1 = inlined_call_operand.vmem [shape: f32[32,16], index: 1, kind: input, shape index: {}]
  %s2 = inlined_call_operand.vmem [shape: f32[32,1], index: 2, kind: input, shape index: {}]
  %s3 = inlined_call_operand.vmem [shape: f32[32,32], index: 3, kind: input, shape index: {}]
  %s4 = inlined_call_operand.vmem [shape: f32[32,1], index: 4, kind: input, shape index: {}]
  %s5 = inlined_call_operand.vmem [shape: f32[32,32], index: 5, kind: input, shape index: {}]
  %s6 = inlined_call_operand.vmem [shape: f32[32,1], index: 6, kind: input, shape index: {}]
  %s7 = inlined_call_operand.vmem [shape: f32[10,32], index: 7, kind: input, shape index: {}]
  %s8 = inlined_call_operand.vmem [shape: f32[10,1], index: 8, kind: input, shape index: {}]
  %s9 = inlined_call_operand.hbm [shape: f32[10,128], index: 9, kind: output, shape index: {}]
  %s10 = sld [smem:[#allocation0]]
  $region46: #{tpu_custom_call.1} parent=0
    _
  %s12 = ssub.s32 1, %s10
  %s13 = scalar_select 0, %s12, %s10
  $region1: #{tpu_custom_call.1} parent=0
    #allocation2 [shape = 'u8[8192]{0}', space=vmem, size = 0x2000, scoped, tag = 'output window, operand 0, single buffered']
    #allocation3 [shape = 's32[1]{0}', space=sflag, size = 0x4, scoped, tag = 'scoped memory for tpu_custom_call.1']
    %14 = vsyncpa [#allocation3], 0
    // Predicated region
    $region2: #{tpu_custom_call.1} parent=1 // pred_check
      _
    $region3: #{tpu_custom_call.1} parent=1 // pred_check_branch
      %16 = sbr.rel (0) target = $region5
    $region4: #{tpu_custom_call.1} parent=1 // pred_region
      _
    $region5: #{tpu_custom_call.1} parent=1 // pred_fallthru
      _
    // Predicated region
    $region6: #{tpu_custom_call.1} parent=1 // pred_check
      _
    $region7: #{tpu_custom_call.1} parent=1 // pred_check_branch
      %18 = sbr.rel (0) target = $region9
    $region8: #{tpu_custom_call.1} parent=1 // pred_region
      _
    $region9: #{tpu_custom_call.1} parent=1 // pred_fallthru
      _
    // Predicated region
    $region10: #{tpu_custom_call.1} parent=1 // pred_check
      _
    $region11: #{tpu_custom_call.1} parent=1 // pred_check_branch
      %20 = sbr.rel (0) target = $region13
    $region12: #{tpu_custom_call.1} parent=1 // pred_region
      _
    $region13: #{tpu_custom_call.1} parent=1 // pred_fallthru
      _
    // Predicated region
    $region14: #{tpu_custom_call.1} parent=1 // pred_check
      _
    $region15: #{tpu_custom_call.1} parent=1 // pred_check_branch
      %22 = sbr.rel (0) target = $region17
    $region16: #{tpu_custom_call.1} parent=1 // pred_region
      _
    $region17: #{tpu_custom_call.1} parent=1 // pred_fallthru
      _
    // Predicated region
    $region18: #{tpu_custom_call.1} parent=1 // pred_check
      _
    $region19: #{tpu_custom_call.1} parent=1 // pred_check_branch
      %24 = sbr.rel (0) target = $region21
    $region20: #{tpu_custom_call.1} parent=1 // pred_region
      _
    $region21: #{tpu_custom_call.1} parent=1 // pred_fallthru
      _
    // Predicated region
    $region22: #{tpu_custom_call.1} parent=1 // pred_check
      _
    $region23: #{tpu_custom_call.1} parent=1 // pred_check_branch
      %26 = sbr.rel (0) target = $region25
    $region24: #{tpu_custom_call.1} parent=1 // pred_region
      _
    $region25: #{tpu_custom_call.1} parent=1 // pred_fallthru
      _
    // Predicated region
    $region26: #{tpu_custom_call.1} parent=1 // pred_check
      _
    $region27: #{tpu_custom_call.1} parent=1 // pred_check_branch
      %28 = sbr.rel (0) target = $region29
    $region28: #{tpu_custom_call.1} parent=1 // pred_region
      _
    $region29: #{tpu_custom_call.1} parent=1 // pred_fallthru
      _
    // Predicated region
    $region30: #{tpu_custom_call.1} parent=1 // pred_check
      _
    $region31: #{tpu_custom_call.1} parent=1 // pred_check_branch
      %30 = sbr.rel (0) target = $region33
    $region32: #{tpu_custom_call.1} parent=1 // pred_region
      _
    $region33: #{tpu_custom_call.1} parent=1 // pred_fallthru
      _
    // Predicated region
    $region34: #{tpu_custom_call.1} parent=1 // pred_check
      _
    $region35: #{tpu_custom_call.1} parent=1 // pred_check_branch
      %32 = sbr.rel (0) target = $region37
    $region36: #{tpu_custom_call.1} parent=1 // pred_region
      _
    $region37: #{tpu_custom_call.1} parent=1 // pred_fallthru
      _
    %v33 = vld [vmem:[%s0] sm:$0xff]
    %v34 = vld [vmem:[%s0 + $0x8] sm:$0xff]
    %v35 = vld [vmem:[%s1] sm:$0xff]
    %v36 = vld [vmem:[%s1 + $0x8] sm:$0xff]
    %v37 = vld [vmem:[%s1 + $0x10] sm:$0xff]
    %v38 = vld [vmem:[%s1 + $0x18] sm:$0xff]
    %v39 = vld [vmem:[%s2] sm:$0xff]
    %v40 = vld [vmem:[%s2 + $0x8] sm:$0xff]
    %v41 = vld [vmem:[%s2 + $0x10] sm:$0xff]
    %v42 = vld [vmem:[%s2 + $0x18] sm:$0xff]
    %44 = vset.pattern.permute.xlu0 0
    %45 = vperm.xlu0 %44, %v39
    %v46 = vpop.permute.xlu0 %45
    %49 = vset.pattern.permute.xlu0 0
    %50 = vperm.xlu0 %49, %v40
    %v51 = vpop.permute.xlu0 %50
    %54 = vset.pattern.permute.xlu0 0
    %55 = vperm.xlu0 %54, %v41
    %v56 = vpop.permute.xlu0 %55
    %59 = vset.pattern.permute.xlu0 0
    %60 = vperm.xlu0 %59, %v42
    %v61 = vpop.permute.xlu0 %60
    %vm63 = vcmask 130048
    %v65 = vsel %vm63, %v35, 0
    %v68 = vsel %vm63, %v36, 0
    %v71 = vsel %vm63, %v37, 0
    %v74 = vsel %vm63, %v38, 0
    %76 = vmatprep.subr.mxu0 0.0
    %77 = vmatpush1.msra.mxu0 %v33
    %78 = vmatprep.subr.mxu0 0.0
    %79 = vmatpush1.msra.mxu0 %v34
    %80 = vmatprep.subr.mxu0 0.0
    %81 = vmatpush1.msra.mxu0 0.0
    %82 = vmatprep.subr.mxu0 0.0
    %83 = vmatpush1.msra.mxu0 0.0
    %84 = vmatprep.subr.mxu0 0.0
    %85 = vmatpush1.msra.mxu0 0.0
    %86 = vmatprep.subr.mxu0 0.0
    %87 = vmatpush1.msra.mxu0 0.0
    %88 = vmatprep.subr.mxu0 0.0
    %89 = vmatpush1.msra.mxu0 0.0
    %90 = vmatprep.subr.mxu0 0.0
    %91 = vmatpush1.msra.mxu0 0.0
    %92 = vmatprep.subr.mxu0 0.0
    %93 = vmatpush1.msra.mxu0 0.0
    %94 = vmatprep.subr.mxu0 0.0
    %95 = vmatpush1.msra.mxu0 0.0
    %96 = vmatprep.subr.mxu0 0.0
    %97 = vmatpush1.msra.mxu0 0.0
    %98 = vmatprep.subr.mxu0 0.0
    %99 = vmatpush1.msra.mxu0 0.0
    %100 = vmatprep.subr.mxu0 0.0
    %101 = vmatpush1.msra.mxu0 0.0
    %102 = vmatprep.subr.mxu0 0.0
    %103 = vmatpush1.msra.mxu0 0.0
    %104 = vmatprep.subr.mxu0 0.0
    %105 = vmatpush1.msra.mxu0 0.0
    %106 = vmatprep.subr.mxu0 0.0
    %107 = vmatpush1.msra.mxu0 0.0
    %108 = vmatprep.subr.mxu0 0.0
    %109 = vmatpush1.msra.mxu0 0.0
    %110 = vmatprep.subr.mxu0 0.0
    %111 = vmatpush1.msra.mxu0 0.0
    %112 = vmatprep.subr.mxu0 0.0
    %113 = vmatpush1.msra.mxu0 0.0
    %114 = vmatprep.subr.mxu0 0.0
    %115 = vmatpush1.msra.mxu0 0.0
    %116 = vmatprep.subr.mxu0 0.0
    %117 = vmatpush1.msra.mxu0 0.0
    %118 = vmatprep.subr.mxu0 0.0
    %119 = vmatpush1.msra.mxu0 0.0
    %120 = vmatprep.subr.mxu0 0.0
    %121 = vmatpush1.msra.mxu0 0.0
    %122 = vmatprep.subr.mxu0 0.0
    %123 = vmatpush1.msra.mxu0 0.0
    %124 = vmatprep.subr.mxu0 0.0
    %125 = vmatpush1.msra.mxu0 0.0
    %126 = vmatprep.subr.mxu0 0.0
    %127 = vmatpush1.msra.mxu0 0.0
    %128 = vmatprep.subr.mxu0 0.0
    %129 = vmatpush1.msra.mxu0 0.0
    %130 = vmatprep.subr.mxu0 0.0
    %131 = vmatpush1.msra.mxu0 0.0
    %132 = vmatprep.subr.mxu0 0.0
    %133 = vmatpush1.msra.mxu0 0.0
    %134 = vmatprep.subr.mxu0 0.0
    %135 = vmatpush1.msra.mxu0 0.0
    %136 = vmatprep.subr.mxu0 0.0
    %137 = vmatpush1.msra.mxu0 0.0
    %138 = vmatprep.subr.mxu0 0.0
    %139 = vmatpush1.msra.mxu0 0.0
    %140 = vmatprep.mubr.f32.mxu0 0.0
    %141 = vmatmul.mubr.f32.gmra.mrb[0].mxu0 %v65
    %v142 = vpop.f32.mrb[0].mxu0
    %v143 = vadd.f32 %v46, %v142
    %v144 = vpop.f32.mrb[0].mxu0
    %145 = vmatprep.mubr.f32.mxu0 0.0
    %146 = vmatmul.mubr.f32.gmra.mrb[0].mxu0 %v68
    %v147 = vpop.f32.mrb[0].mxu0
    %v148 = vadd.f32 %v51, %v147
    %v149 = vpop.f32.mrb[0].mxu0
    %150 = vmatprep.mubr.f32.mxu0 0.0
    %151 = vmatmul.mubr.f32.gmra.mrb[0].mxu0 %v71
    %v152 = vpop.f32.mrb[0].mxu0
    %v153 = vadd.f32 %v56, %v152
    %v154 = vpop.f32.mrb[0].mxu0
    %155 = vmatprep.mubr.f32.mxu0 0.0
    %156 = vmatmul.mubr.f32.gmra.mrb[0].mxu0 %v74
    %v157 = vpop.f32.mrb[0].mxu0
    %v158 = vadd.f32 %v61, %v157
    %v159 = vpop.f32.mrb[0].mxu0
    %160 = vdwg.mxu0
    %v161 = vtanh.pop %v143
    %v162 = vtanh.pop %v148
    %v163 = vtanh.pop %v153
    %v164 = vtanh.pop %v158
    %v165 = vtanh.pop %v161
    %v166 = vtanh.pop %v162
    %v167 = vtanh.pop %v163
    %v168 = vtanh.pop %v164
    %v169 = vld [vmem:[%s3] sm:$0xff]
    %v170 = vld [vmem:[%s3 + $0x8] sm:$0xff]
    %v171 = vld [vmem:[%s3 + $0x10] sm:$0xff]
    %v172 = vld [vmem:[%s3 + $0x18] sm:$0xff]
    %v173 = vld [vmem:[%s4] sm:$0xff]
    %v174 = vld [vmem:[%s4 + $0x8] sm:$0xff]
    %v175 = vld [vmem:[%s4 + $0x10] sm:$0xff]
    %v176 = vld [vmem:[%s4 + $0x18] sm:$0xff]
    %178 = vset.pattern.permute.xlu0 0
    %179 = vperm.xlu0 %178, %v173
    %v180 = vpop.permute.xlu0 %179
    %183 = vset.pattern.permute.xlu0 0
    %184 = vperm.xlu0 %183, %v174
    %v185 = vpop.permute.xlu0 %184
    %188 = vset.pattern.permute.xlu0 0
    %189 = vperm.xlu0 %188, %v175
    %v190 = vpop.permute.xlu0 %189
    %193 = vset.pattern.permute.xlu0 0
    %194 = vperm.xlu0 %193, %v176
    %v195 = vpop.permute.xlu0 %194
    %vm197 = vcmask 261120
    %v199 = vsel %vm197, %v169, 0
    %v202 = vsel %vm197, %v170, 0
    %v205 = vsel %vm197, %v171, 0
    %v208 = vsel %vm197, %v172, 0
    %210 = vmatprep.subr.mxu0 0.0
    %211 = vmatpush1.msra.mxu0 %v165
    %212 = vmatprep.subr.mxu0 0.0
    %213 = vmatpush1.msra.mxu0 %v166
    %214 = vmatprep.subr.mxu0 0.0
    %215 = vmatpush1.msra.mxu0 %v167
    %216 = vmatprep.subr.mxu0 0.0
    %217 = vmatpush1.msra.mxu0 %v168
    %218 = vmatprep.subr.mxu0 0.0
    %219 = vmatpush1.msra.mxu0 0.0
    %220 = vmatprep.subr.mxu0 0.0
    %221 = vmatpush1.msra.mxu0 0.0
    %222 = vmatprep.subr.mxu0 0.0
    %223 = vmatpush1.msra.mxu0 0.0
    %224 = vmatprep.subr.mxu0 0.0
    %225 = vmatpush1.msra.mxu0 0.0
    %226 = vmatprep.subr.mxu0 0.0
    %227 = vmatpush1.msra.mxu0 0.0
    %228 = vmatprep.subr.mxu0 0.0
    %229 = vmatpush1.msra.mxu0 0.0
    %230 = vmatprep.subr.mxu0 0.0
    %231 = vmatpush1.msra.mxu0 0.0
    %232 = vmatprep.subr.mxu0 0.0
    %233 = vmatpush1.msra.mxu0 0.0
    %234 = vmatprep.subr.mxu0 0.0
    %235 = vmatpush1.msra.mxu0 0.0
    %236 = vmatprep.subr.mxu0 0.0
    %237 = vmatpush1.msra.mxu0 0.0
    %238 = vmatprep.subr.mxu0 0.0
    %239 = vmatpush1.msra.mxu0 0.0
    %240 = vmatprep.subr.mxu0 0.0
    %241 = vmatpush1.msra.mxu0 0.0
    %242 = vmatprep.subr.mxu0 0.0
    %243 = vmatpush1.msra.mxu0 0.0
    %244 = vmatprep.subr.mxu0 0.0
    %245 = vmatpush1.msra.mxu0 0.0
    %246 = vmatprep.subr.mxu0 0.0
    %247 = vmatpush1.msra.mxu0 0.0
    %248 = vmatprep.subr.mxu0 0.0
    %249 = vmatpush1.msra.mxu0 0.0
    %250 = vmatprep.subr.mxu0 0.0
    %251 = vmatpush1.msra.mxu0 0.0
    %252 = vmatprep.subr.mxu0 0.0
    %253 = vmatpush1.msra.mxu0 0.0
    %254 = vmatprep.subr.mxu0 0.0
    %255 = vmatpush1.msra.mxu0 0.0
    %256 = vmatprep.subr.mxu0 0.0
    %257 = vmatpush1.msra.mxu0 0.0
    %258 = vmatprep.subr.mxu0 0.0
    %259 = vmatpush1.msra.mxu0 0.0
    %260 = vmatprep.subr.mxu0 0.0
    %261 = vmatpush1.msra.mxu0 0.0
    %262 = vmatprep.subr.mxu0 0.0
    %263 = vmatpush1.msra.mxu0 0.0
    %264 = vmatprep.subr.mxu0 0.0
    %265 = vmatpush1.msra.mxu0 0.0
    %266 = vmatprep.subr.mxu0 0.0
    %267 = vmatpush1.msra.mxu0 0.0
    %268 = vmatprep.subr.mxu0 0.0
    %269 = vmatpush1.msra.mxu0 0.0
    %270 = vmatprep.subr.mxu0 0.0
    %271 = vmatpush1.msra.mxu0 0.0
    %272 = vmatprep.subr.mxu0 0.0
    %273 = vmatpush1.msra.mxu0 0.0
    %274 = vmatprep.mubr.f32.mxu0 0.0
    %275 = vmatmul.mubr.f32.gmra.mrb[0].mxu0 %v199
    %v276 = vpop.f32.mrb[0].mxu0
    %v277 = vadd.f32 %v180, %v276
    %v278 = vpop.f32.mrb[0].mxu0
    %279 = vmatprep.mubr.f32.mxu0 0.0
    %280 = vmatmul.mubr.f32.gmra.mrb[0].mxu0 %v202
    %v281 = vpop.f32.mrb[0].mxu0
    %v282 = vadd.f32 %v185, %v281
    %v283 = vpop.f32.mrb[0].mxu0
    %284 = vmatprep.mubr.f32.mxu0 0.0
    %285 = vmatmul.mubr.f32.gmra.mrb[0].mxu0 %v205
    %v286 = vpop.f32.mrb[0].mxu0
    %v287 = vadd.f32 %v190, %v286
    %v288 = vpop.f32.mrb[0].mxu0
    %289 = vmatprep.mubr.f32.mxu0 0.0
    %290 = vmatmul.mubr.f32.gmra.mrb[0].mxu0 %v208
    %v291 = vpop.f32.mrb[0].mxu0
    %v292 = vadd.f32 %v195, %v291
    %v293 = vpop.f32.mrb[0].mxu0
    %294 = vdwg.mxu0
    %v295 = vtanh.pop %v277
    %v296 = vtanh.pop %v282
    %v297 = vtanh.pop %v287
    %v298 = vtanh.pop %v292
    %v299 = vtanh.pop %v295
    %v300 = vtanh.pop %v296
    %v301 = vtanh.pop %v297
    %v302 = vtanh.pop %v298
    %v303 = vld [vmem:[%s5] sm:$0xff]
    %v304 = vld [vmem:[%s5 + $0x8] sm:$0xff]
    %v305 = vld [vmem:[%s5 + $0x10] sm:$0xff]
    %v306 = vld [vmem:[%s5 + $0x18] sm:$0xff]
    %v307 = vld [vmem:[%s6] sm:$0xff]
    %v308 = vld [vmem:[%s6 + $0x8] sm:$0xff]
    %v309 = vld [vmem:[%s6 + $0x10] sm:$0xff]
    %v310 = vld [vmem:[%s6 + $0x18] sm:$0xff]
    %312 = vset.pattern.permute.xlu0 0
    %313 = vperm.xlu0 %312, %v307
    %v314 = vpop.permute.xlu0 %313
    %317 = vset.pattern.permute.xlu0 0
    %318 = vperm.xlu0 %317, %v308
    %v319 = vpop.permute.xlu0 %318
    %322 = vset.pattern.permute.xlu0 0
    %323 = vperm.xlu0 %322, %v309
    %v324 = vpop.permute.xlu0 %323
    %327 = vset.pattern.permute.xlu0 0
    %328 = vperm.xlu0 %327, %v310
    %v329 = vpop.permute.xlu0 %328
    %v332 = vsel %vm197, %v303, 0
    %v335 = vsel %vm197, %v304, 0
    %v338 = vsel %vm197, %v305, 0
    %v341 = vsel %vm197, %v306, 0
    %343 = vmatprep.subr.mxu0 0.0
    %344 = vmatpush1.msra.mxu0 %v299
    %345 = vmatprep.subr.mxu0 0.0
    %346 = vmatpush1.msra.mxu0 %v300
    %347 = vmatprep.subr.mxu0 0.0
    %348 = vmatpush1.msra.mxu0 %v301
    %349 = vmatprep.subr.mxu0 0.0
    %350 = vmatpush1.msra.mxu0 %v302
    %351 = vmatprep.subr.mxu0 0.0
    %352 = vmatpush1.msra.mxu0 0.0
    %353 = vmatprep.subr.mxu0 0.0
    %354 = vmatpush1.msra.mxu0 0.0
    %355 = vmatprep.subr.mxu0 0.0
    %356 = vmatpush1.msra.mxu0 0.0
    %357 = vmatprep.subr.mxu0 0.0
    %358 = vmatpush1.msra.mxu0 0.0
    %359 = vmatprep.subr.mxu0 0.0
    %360 = vmatpush1.msra.mxu0 0.0
    %361 = vmatprep.subr.mxu0 0.0
    %362 = vmatpush1.msra.mxu0 0.0
    %363 = vmatprep.subr.mxu0 0.0
    %364 = vmatpush1.msra.mxu0 0.0
    %365 = vmatprep.subr.mxu0 0.0
    %366 = vmatpush1.msra.mxu0 0.0
    %367 = vmatprep.subr.mxu0 0.0
    %368 = vmatpush1.msra.mxu0 0.0
    %369 = vmatprep.subr.mxu0 0.0
    %370 = vmatpush1.msra.mxu0 0.0
    %371 = vmatprep.subr.mxu0 0.0
    %372 = vmatpush1.msra.mxu0 0.0
    %373 = vmatprep.subr.mxu0 0.0
    %374 = vmatpush1.msra.mxu0 0.0
    %375 = vmatprep.subr.mxu0 0.0
    %376 = vmatpush1.msra.mxu0 0.0
    %377 = vmatprep.subr.mxu0 0.0
    %378 = vmatpush1.msra.mxu0 0.0
    %379 = vmatprep.subr.mxu0 0.0
    %380 = vmatpush1.msra.mxu0 0.0
    %381 = vmatprep.subr.mxu0 0.0
    %382 = vmatpush1.msra.mxu0 0.0
    %383 = vmatprep.subr.mxu0 0.0
    %384 = vmatpush1.msra.mxu0 0.0
    %385 = vmatprep.subr.mxu0 0.0
    %386 = vmatpush1.msra.mxu0 0.0
    %387 = vmatprep.subr.mxu0 0.0
    %388 = vmatpush1.msra.mxu0 0.0
    %389 = vmatprep.subr.mxu0 0.0
    %390 = vmatpush1.msra.mxu0 0.0
    %391 = vmatprep.subr.mxu0 0.0
    %392 = vmatpush1.msra.mxu0 0.0
    %393 = vmatprep.subr.mxu0 0.0
    %394 = vmatpush1.msra.mxu0 0.0
    %395 = vmatprep.subr.mxu0 0.0
    %396 = vmatpush1.msra.mxu0 0.0
    %397 = vmatprep.subr.mxu0 0.0
    %398 = vmatpush1.msra.mxu0 0.0
    %399 = vmatprep.subr.mxu0 0.0
    %400 = vmatpush1.msra.mxu0 0.0
    %401 = vmatprep.subr.mxu0 0.0
    %402 = vmatpush1.msra.mxu0 0.0
    %403 = vmatprep.subr.mxu0 0.0
    %404 = vmatpush1.msra.mxu0 0.0
    %405 = vmatprep.subr.mxu0 0.0
    %406 = vmatpush1.msra.mxu0 0.0
    %407 = vmatprep.mubr.f32.mxu0 0.0
    %408 = vmatmul.mubr.f32.gmra.mrb[0].mxu0 %v332
    %v409 = vpop.f32.mrb[0].mxu0
    %v410 = vadd.f32 %v314, %v409
    %v411 = vpop.f32.mrb[0].mxu0
    %412 = vmatprep.mubr.f32.mxu0 0.0
    %413 = vmatmul.mubr.f32.gmra.mrb[0].mxu0 %v335
    %v414 = vpop.f32.mrb[0].mxu0
    %v415 = vadd.f32 %v319, %v414
    %v416 = vpop.f32.mrb[0].mxu0
    %417 = vmatprep.mubr.f32.mxu0 0.0
    %418 = vmatmul.mubr.f32.gmra.mrb[0].mxu0 %v338
    %v419 = vpop.f32.mrb[0].mxu0
    %v420 = vadd.f32 %v324, %v419
    %v421 = vpop.f32.mrb[0].mxu0
    %422 = vmatprep.mubr.f32.mxu0 0.0
    %423 = vmatmul.mubr.f32.gmra.mrb[0].mxu0 %v341
    %v424 = vpop.f32.mrb[0].mxu0
    %v425 = vadd.f32 %v329, %v424
    %v426 = vpop.f32.mrb[0].mxu0
    %427 = vdwg.mxu0
    %v428 = vtanh.pop %v410
    %v429 = vtanh.pop %v415
    %v430 = vtanh.pop %v420
    %v431 = vtanh.pop %v425
    %v432 = vtanh.pop %v428
    %v433 = vtanh.pop %v429
    %v434 = vtanh.pop %v430
    %v435 = vtanh.pop %v431
    %v436 = vld [vmem:[%s7] sm:$0xff]
    %v437 = vld [vmem:[%s7 + $0x8] sm:$0x3]
    %v438 = vld [vmem:[%s8] sm:$0xff]
    %v439 = vld [vmem:[%s8 + $0x8] sm:$0x3]
    %441 = vset.pattern.permute.xlu0 0
    %442 = vperm.xlu0 %441, %v438
    %v443 = vpop.permute.xlu0 %442
    %446 = vset.pattern.permute.xlu0 0
    %447 = vperm.xlu0 %446, %v439
    %v448 = vpop.permute.xlu0 %447
    %v451 = vsel %vm197, %v436, 0
    %v454 = vsel %vm197, %v437, 0
    %456 = vmatprep.subr.mxu0 0.0
    %457 = vmatpush1.msra.mxu0 %v432
    %458 = vmatprep.subr.mxu0 0.0
    %459 = vmatpush1.msra.mxu0 %v433
    %460 = vmatprep.subr.mxu0 0.0
    %461 = vmatpush1.msra.mxu0 %v434
    %462 = vmatprep.subr.mxu0 0.0
    %463 = vmatpush1.msra.mxu0 %v435
    %464 = vmatprep.subr.mxu0 0.0
    %465 = vmatpush1.msra.mxu0 0.0
    %466 = vmatprep.subr.mxu0 0.0
    %467 = vmatpush1.msra.mxu0 0.0
    %468 = vmatprep.subr.mxu0 0.0
    %469 = vmatpush1.msra.mxu0 0.0
    %470 = vmatprep.subr.mxu0 0.0
    %471 = vmatpush1.msra.mxu0 0.0
    %472 = vmatprep.subr.mxu0 0.0
    %473 = vmatpush1.msra.mxu0 0.0
    %474 = vmatprep.subr.mxu0 0.0
    %475 = vmatpush1.msra.mxu0 0.0
    %476 = vmatprep.subr.mxu0 0.0
    %477 = vmatpush1.msra.mxu0 0.0
    %478 = vmatprep.subr.mxu0 0.0
    %479 = vmatpush1.msra.mxu0 0.0
    %480 = vmatprep.subr.mxu0 0.0
    %481 = vmatpush1.msra.mxu0 0.0
    %482 = vmatprep.subr.mxu0 0.0
    %483 = vmatpush1.msra.mxu0 0.0
    %484 = vmatprep.subr.mxu0 0.0
    %485 = vmatpush1.msra.mxu0 0.0
    %486 = vmatprep.subr.mxu0 0.0
    %487 = vmatpush1.msra.mxu0 0.0
    %488 = vmatprep.subr.mxu0 0.0
    %489 = vmatpush1.msra.mxu0 0.0
    %490 = vmatprep.subr.mxu0 0.0
    %491 = vmatpush1.msra.mxu0 0.0
    %492 = vmatprep.subr.mxu0 0.0
    %493 = vmatpush1.msra.mxu0 0.0
    %494 = vmatprep.subr.mxu0 0.0
    %495 = vmatpush1.msra.mxu0 0.0
    %496 = vmatprep.subr.mxu0 0.0
    %497 = vmatpush1.msra.mxu0 0.0
    %498 = vmatprep.subr.mxu0 0.0
    %499 = vmatpush1.msra.mxu0 0.0
    %500 = vmatprep.subr.mxu0 0.0
    %501 = vmatpush1.msra.mxu0 0.0
    %502 = vmatprep.subr.mxu0 0.0
    %503 = vmatpush1.msra.mxu0 0.0
    %504 = vmatprep.subr.mxu0 0.0
    %505 = vmatpush1.msra.mxu0 0.0
    %506 = vmatprep.subr.mxu0 0.0
    %507 = vmatpush1.msra.mxu0 0.0
    %508 = vmatprep.subr.mxu0 0.0
    %509 = vmatpush1.msra.mxu0 0.0
    %510 = vmatprep.subr.mxu0 0.0
    %511 = vmatpush1.msra.mxu0 0.0
    %512 = vmatprep.subr.mxu0 0.0
    %513 = vmatpush1.msra.mxu0 0.0
    %514 = vmatprep.subr.mxu0 0.0
    %515 = vmatpush1.msra.mxu0 0.0
    %516 = vmatprep.subr.mxu0 0.0
    %517 = vmatpush1.msra.mxu0 0.0
    %518 = vmatprep.subr.mxu0 0.0
    %519 = vmatpush1.msra.mxu0 0.0
    %520 = vmatprep.mubr.f32.mxu0 0.0
    %521 = vmatmul.mubr.f32.gmra.mrb[0].mxu0 %v451
    %v522 = vpop.f32.mrb[0].mxu0
    %v523 = vadd.f32 %v443, %v522
    %v524 = vpop.f32.mrb[0].mxu0
    %525 = vmatprep.mubr.f32.mxu0 0.0
    %526 = vmatmul.mubr.f32.gmra.mrb[0].mxu0 %v454
    %v527 = vpop.f32.mrb[0].mxu0
    %v528 = vadd.f32 %v448, %v527
    %v529 = vpop.f32.mrb[0].mxu0
    %530 = vdwg.mxu0
    %v531 = vlaneseq
    %v532 = vshrl.u32 %v531, 7
    %v533 = vadd.s32 %v532, 8
    %vm534 = vcmp.ge.s32.totalorder %v532, 3
    %vm535 = vcmp.ge.s32.totalorder %v533, 3
    %vm536 = vcmp.lt.s32.totalorder %v532, 7
    %vm537 = vcmp.lt.s32.totalorder %v533, 7
    %vm538 = vmand %vm534, %vm536
    %vm539 = vmand %vm535, %vm537
    %vm540 = vcmp.ge.s32.totalorder %v532, 7
    %vm541 = vcmp.ge.s32.totalorder %v533, 7
    %v542 = vtanh.pop %v523
    %v543 = vtanh.pop %v528
    %v544 = vxor.u32 %v523, 2147483648
    %v545 = vxor.u32 %v528, 2147483648
    %v546 = vmul.f32 %v544, 1.442695
    %v547 = vpow.pop %v546
    %v548 = vmul.f32 %v545, 1.442695
    %v549 = vpow.pop %v548
    %v550 = vadd.f32 %v547, 1.0
    %v551 = vadd.f32 %v549, 1.0
    %v552 = vrcp.pop %v550
    %v553 = vmul.f32 1.0, %v552
    %v554 = vrcp.pop %v551
    %v555 = vmul.f32 1.0, %v554
    %v556 = vmul.f32 %v542, %v542
    %v557 = vmul.f32 %v543, %v543
    %v558 = vsel %vm538, %v556, 0.0
    %v559 = vsel %vm539, %v557, 0.0
    %vm560 = vcmask 1041408
    %v561 = vsel %vm560, %v559, 0.0
    %v562 = vadd.f32 %v558, %v561
    %v563 = vrot.slane %v562, 4
    %v564 = vadd.f32 %v562, %v563
    %v565 = vrot.slane %v564, 2
    %v566 = vadd.f32 %v564, %v565
    %v567 = vrot.slane %v566, 1
    %v568 = vadd.f32 %v566, %v567
    %v569 = vrsqrt.pop %v568
    %v570 = vmul.f32 %v542, %v569
    %v571 = vmul.f32 %v543, %v569
    %v572 = vsel %vm540, %v553, %v523
    %v573 = vsel %vm541, %v555, %v528
    %v574 = vsel %vm538, %v570, %v572
    %v575 = vsel %vm539, %v571, %v573
    %576 = vst [vmem:[#allocation2] sm:$0xff] %v574
    %577 = vst [vmem:[#allocation2 + $0x8] sm:$0x3] %v575
    // Predicated region
    $region38: #{tpu_custom_call.1} parent=1 // pred_check
      _
    $region39: #{tpu_custom_call.1} parent=1 // pred_check_branch
      %579 = sbr.rel (0) target = $region41
    $region40: #{tpu_custom_call.1} parent=1 // pred_region
      %s581 = ssub.s32 256, 256
      %582 = vsyncadd [#allocation3], %s581
      %s583 = sshll.u32 [#allocation2], 4
      %s584 = int_to_ptr.vmem [resolvable:$true] %s583
      %589 = dma.vmem_to_hbm [thread:$0]  %s584, 256, %s9, [#allocation3], 128, 128, 8
    $region41: #{tpu_custom_call.1} parent=1 // pred_fallthru
      _
    // Predicated region
    $region42: #{tpu_custom_call.1} parent=1 // pred_check
      _
    $region43: #{tpu_custom_call.1} parent=1 // pred_check_branch
      %591 = sbr.rel (0) target = $region45
    $region44: #{tpu_custom_call.1} parent=1 // pred_region
      %592 = dma.done [#allocation3], 256
    $region45: #{tpu_custom_call.1} parent=1 // pred_fallthru
      _
    %593 = vsyncpa [#allocation3], 1

</llo_original>
